<compile_context>
chip_gen: v5e
topology: v5e:2x2
jax: 0.10.0
libtpu: 0.0.40
codegen_flags: <defaults>
</compile_context>

<pallas_src>
import functools

import jax
import jax.numpy as jnp
from jax.experimental import pallas as pl
from jax.experimental.pallas import tpu as pltpu


def single_conv_kernel(x_ref, w_ref, b_ref, out_ref, *, Wp, Sp):
    # x_ref  : (Cg, Sp)      f32 zero-padded input, Cg = G*Cin packed channels
    # w_ref  : (Og, 9*Cg)    bf16 folded conv+BN weights (tap-major columns,
    #                        G-block-diagonal per tap), Og = G*Cout
    # b_ref  : (Og, 1)       f32 folded BN bias
    # out_ref: (Og, Sp)      result over the padded flat spatial grid
    x = x_ref[...]                                        # (Cg, Sp) f32
    residual = x                                          # replaced at tap (1,1)
    taps = []
    for k in range(9):                                    # static unroll, 3x3 taps
        dy, dx = k // 3, k % 3
        o = dy * Wp + dx                                  # flat tap offset
        # Shift left by `o` (== roll right by Sp - o); XLU lane rotation.
        # Wrapped lanes only land on discarded padded/tail positions.
        slab = x if o == 0 else pltpu.roll(x, shift=Sp - o, axis=1)
        if (dy, dx) == (1, 1):
            residual = slab                               # identity tap == residual
        taps.append(slab)
    # im2col: 9 sublane-aligned slabs stacked -> (9*Cg, Sp); single bf16 cast.
    col = jnp.concatenate(taps, axis=0).astype(jnp.bfloat16)
    # One weights-stationary MXU matmul, K = 9*Cg, wide spatial dim on lanes.
    y = jnp.dot(w_ref[...], col, preferred_element_type=jnp.float32)  # (Og, Sp) f32
    y = jnp.maximum(y + b_ref[...], 0.0)                  # folded BatchNorm + ReLU
    y = jnp.maximum(y + residual, 0.0)                    # skip connection + ReLU
    out_ref[...] = y.astype(out_ref.dtype)


def single_conv(x_nchw, w_oihw, gamma, beta, run_mean, run_var, eps=1e-5):
    N, Cin, H, W = x_nchw.shape
    Cout = w_oihw.shape[0]
    assert Cin == Cout, "no downsample branch -> residual requires Cin == Cout"
    Hp, Wp = H + 2, W + 2
    sp_raw = Hp * Wp
    Sp = ((sp_raw + 127) // 128) * 128        # lane-dense flat spatial extent
    assert Sp >= sp_raw                       # roll-wraparound safety invariant

    # Pack G=2 images per grid step onto sublanes when channels underfill the
    # 8-sublane f32 vreg and the batch pairs up; otherwise one image per step.
    G = 2 if (N % 2 == 0 and 2 * Cin <= 8) else 1
    P = N // G
    Cg, Og = G * Cin, G * Cout

    # SAME padding for the 3x3/stride-1 conv, spatial flattened onto lanes and
    # padded to a multiple of 128 so loads/stores are unmasked.
    xpad = jnp.pad(x_nchw, ((0, 0), (0, 0), (1, 1), (1, 1)))
    xflat = jnp.pad(xpad.reshape(N, Cin, sp_raw),
                    ((0, 0), (0, 0), (0, Sp - sp_raw)))
    xflat = xflat.reshape(P, Cg, Sp)          # free reshape: sublane-dense pack

    # Fold inference BatchNorm into the conv: scale -> weights, shift -> bias.
    inv_std = gamma / jnp.sqrt(run_var + eps)                        # (Cout,)
    w9 = jnp.transpose(w_oihw, (2, 3, 0, 1)).reshape(9, Cout, Cin)   # tap-major
    w9 = w9 * inv_std[None, :, None]
    if G == 2:
        # Block-diagonal per tap so packed images contract only against their
        # own channels: (9, 2*Cout, 2*Cin).
        z = jnp.zeros_like(w9)
        w9 = jnp.concatenate([jnp.concatenate([w9, z], axis=2),
                              jnp.concatenate([z, w9], axis=2)], axis=1)
    # (Og, 9*Cg): columns ordered [tap k, packed channel j] to match the
    # in-kernel im2col row order.  bf16 for the MXU-native path.
    w_flat = jnp.transpose(w9, (1, 0, 2)).reshape(Og, 9 * Cg).astype(jnp.bfloat16)
    bias = jnp.tile((beta - run_mean * inv_std).reshape(Cout, 1), (G, 1))  # (Og,1)

    kern = functools.partial(single_conv_kernel, Wp=Wp, Sp=Sp)
    out_flat = pl.pallas_call(
        kern,
        out_shape=jax.ShapeDtypeStruct((P, Og, Sp), x_nchw.dtype),
        grid_spec=pltpu.PrefetchScalarGridSpec(
            num_scalar_prefetch=0,
            grid=(P,),
            in_specs=[
                pl.BlockSpec((pl.Squeezed(), Cg, Sp), lambda n: (n, 0, 0)),
                pl.BlockSpec((Og, 9 * Cg), lambda n: (0, 0)),   # resident weights
                pl.BlockSpec((Og, 1), lambda n: (0, 0)),        # resident bias
            ],
            out_specs=pl.BlockSpec((pl.Squeezed(), Og, Sp), lambda n: (n, 0, 0)),
        ),
        compiler_params=pltpu.CompilerParams(
            dimension_semantics=("parallel",),
            vmem_limit_bytes=32 * 1024 * 1024,
        ),
    )(xflat, w_flat, bias)

    # Unpack the image pairs (free reshape) and trim the padded flat grid back
    # to the valid H x W outputs (already NCHW).
    out = out_flat.reshape(N, Cout, Sp)[:, :, :sp_raw]
    return out.reshape(N, Cout, Hp, Wp)[:, :, :H, :W]


def _reference(x_nchw, w_oihw, gamma, beta, run_mean, run_var, eps=1e-5):
    conv = jax.lax.conv_general_dilated(
        x_nchw, w_oihw, window_strides=(1, 1), padding="SAME",
        dimension_numbers=("NCHW", "OIHW", "NCHW"))
    bn = (gamma[None, :, None, None] * (conv - run_mean[None, :, None, None])
          / jnp.sqrt(run_var[None, :, None, None] + eps)
          + beta[None, :, None, None])
    out = jnp.maximum(bn, 0.0)
    out = out + x_nchw
    return jnp.maximum(out, 0.0)


if __name__ == "__main__":
    N, C, H, W = 2, 4, 16, 16          # inplanes == planes == 4
    key = jax.random.PRNGKey(0)
    kx, kw, kg, kb, km, kv = jax.random.split(key, 6)

    x = jax.random.normal(kx, (N, C, H, W), jnp.float32)
    # conv(inplanes, planes, kernel_size=3): weight shape (planes, inplanes, 3, 3)
    w_conv = jax.random.normal(kw, (C, C, 3, 3), jnp.float32) * 0.1
    # BatchNorm(planes) parameters / running stats (inference semantics)
    gamma = 1.0 + 0.1 * jax.random.normal(kg, (C,), jnp.float32)
    beta = 0.1 * jax.random.normal(kb, (C,), jnp.float32)
    run_mean = 0.1 * jax.random.normal(km, (C,), jnp.float32)
    run_var = jnp.abs(jax.random.normal(kv, (C,), jnp.float32)) + 0.5

    out = jax.block_until_ready(single_conv(x, w_conv, gamma, beta, run_mean, run_var))

    ref = _reference(x, w_conv, gamma, beta, run_mean, run_var)
    assert out.shape == (N, C, H, W)
    # bf16 matmul operands with f32 accumulation -> slightly relaxed tolerance.
    assert jnp.allclose(out, ref, rtol=2e-2, atol=2e-2), "mismatch vs reference"
    print("KERNEL_OK")
</pallas_src>

<mosaic_0001>
module attributes {stable_mosaic.version = 11 : i64} {
  func.func @single_conv_kernel(%arg0: i32, %arg1: memref<1x8x384xf32, #tpu.memory_space<vmem>>, %arg2: memref<8x72xbf16, #tpu.memory_space<vmem>>, %arg3: memref<8x1xf32, #tpu.memory_space<vmem>>, %arg4: memref<1x8x384xf32, #tpu.memory_space<vmem>>) attributes {dimension_semantics = [#tpu.dimension_semantics<parallel>], iteration_bounds = array<i64: 1>, scalar_prefetch = 0 : i64, scratch_operands = 0 : i64, tpu.core_type = #tpu.core_type<tc>, window_params = [{transform_indices = @transform_0, window_bounds = array<i64: 1, 8, 384>}, {pipeline_mode = #tpu.pipeline_mode<synchronous>, transform_indices = @transform_1, window_bounds = array<i64: 8, 72>}, {pipeline_mode = #tpu.pipeline_mode<synchronous>, transform_indices = @transform_2, window_bounds = array<i64: 8, 1>}, {transform_indices = @transform_3, window_bounds = array<i64: 1, 8, 384>}]} {
    %c0 = arith.constant 0 : index
    %c0_0 = arith.constant 0 : index
    %c0_1 = arith.constant 0 : index
    %0 = vector.load %arg1[%c0, %c0_0, %c0_1] : memref<1x8x384xf32, #tpu.memory_space<vmem>>, vector<1x8x384xf32>
    %1 = vector.shape_cast %0 : vector<1x8x384xf32> to vector<8x384xf32>
    %c383_i32 = arith.constant 383 : i32
    %2 = tpu.dynamic_rotate %1 by %c383_i32 dim 1 : vector<8x384xf32>, i32 -> vector<8x384xf32>
    %c382_i32 = arith.constant 382 : i32
    %3 = tpu.dynamic_rotate %1 by %c382_i32 dim 1 : vector<8x384xf32>, i32 -> vector<8x384xf32>
    %c366_i32 = arith.constant 366 : i32
    %4 = tpu.dynamic_rotate %1 by %c366_i32 dim 1 : vector<8x384xf32>, i32 -> vector<8x384xf32>
    %c365_i32 = arith.constant 365 : i32
    %5 = tpu.dynamic_rotate %1 by %c365_i32 dim 1 : vector<8x384xf32>, i32 -> vector<8x384xf32>
    %c364_i32 = arith.constant 364 : i32
    %6 = tpu.dynamic_rotate %1 by %c364_i32 dim 1 : vector<8x384xf32>, i32 -> vector<8x384xf32>
    %c348_i32 = arith.constant 348 : i32
    %7 = tpu.dynamic_rotate %1 by %c348_i32 dim 1 : vector<8x384xf32>, i32 -> vector<8x384xf32>
    %c347_i32 = arith.constant 347 : i32
    %8 = tpu.dynamic_rotate %1 by %c347_i32 dim 1 : vector<8x384xf32>, i32 -> vector<8x384xf32>
    %c346_i32 = arith.constant 346 : i32
    %9 = tpu.dynamic_rotate %1 by %c346_i32 dim 1 : vector<8x384xf32>, i32 -> vector<8x384xf32>
    %10 = tpu.concatenate %1, %2, %3, %4, %5, %6, %7, %8, %9 in 0 : vector<8x384xf32>, vector<8x384xf32>, vector<8x384xf32>, vector<8x384xf32>, vector<8x384xf32>, vector<8x384xf32>, vector<8x384xf32>, vector<8x384xf32>, vector<8x384xf32> -> vector<72x384xf32>
    %11 = arith.truncf %10 : vector<72x384xf32> to vector<72x384xbf16>
    %c0_2 = arith.constant 0 : index
    %c0_3 = arith.constant 0 : index
    %12 = vector.load %arg2[%c0_2, %c0_3] : memref<8x72xbf16, #tpu.memory_space<vmem>>, vector<8x72xbf16>
    %cst = arith.constant dense<0.000000e+00> : vector<8x384xf32>
    %13 = tpu.matmul %12, %11, %cst {dimension_numbers = #tpu.dot_dimension_numbers<[1], [0], [0], [1], [0, 0, 1, 1], [], []>} : vector<8x72xbf16>, vector<72x384xbf16>, vector<8x384xf32> -> vector<8x384xf32>
    %c0_4 = arith.constant 0 : index
    %c0_5 = arith.constant 0 : index
    %14 = vector.load %arg3[%c0_4, %c0_5] : memref<8x1xf32, #tpu.memory_space<vmem>>, vector<8x1xf32>
    %15 = vector.broadcast %14 : vector<8x1xf32> to vector<8x384xf32>
    %16 = arith.addf %13, %15 : vector<8x384xf32>
    %cst_6 = arith.constant 0.000000e+00 : f32
    %17 = vector.broadcast %cst_6 : f32 to vector<8x384xf32>
    %18 = arith.maximumf %16, %17 : vector<8x384xf32>
    %19 = arith.addf %18, %5 : vector<8x384xf32>
    %cst_7 = arith.constant 0.000000e+00 : f32
    %20 = vector.broadcast %cst_7 : f32 to vector<8x384xf32>
    %21 = arith.maximumf %19, %20 : vector<8x384xf32>
    %c0_8 = arith.constant 0 : index
    %c0_9 = arith.constant 0 : index
    %c0_10 = arith.constant 0 : index
    %22 = vector.load %arg4[%c0_8, %c0_9, %c0_10] : memref<1x8x384xf32, #tpu.memory_space<vmem>>, vector<1x8x384xf32>
    %23 = vector.shape_cast %22 : vector<1x8x384xf32> to vector<8x384xf32>
    %24 = vector.shape_cast %21 : vector<8x384xf32> to vector<1x8x384xf32>
    tpu.vector_store %arg4[%c0_8, %c0_9, %c0_10], %24 {strides = array<i32>} : memref<1x8x384xf32, #tpu.memory_space<vmem>>, vector<1x8x384xf32>,
    return
  }
  func.func @transform_0(%arg0: i32) -> (i32, i32, i32) {
    %c0_i32 = arith.constant 0 : i32
    %c0_i32_0 = arith.constant 0 : i32
    %c0_i32_1 = arith.constant 0 : i32
    return %arg0, %c0_i32, %c0_i32_0 : i32, i32, i32
  }
  func.func @transform_1(%arg0: i32) -> (i32, i32) {
    %c0_i32 = arith.constant 0 : i32
    %c0_i32_0 = arith.constant 0 : i32
    %c0_i32_1 = arith.constant 0 : i32
    return %c0_i32, %c0_i32_0 : i32, i32
  }
  func.func @transform_2(%arg0: i32) -> (i32, i32) {
    %c0_i32 = arith.constant 0 : i32
    %c0_i32_0 = arith.constant 0 : i32
    %c0_i32_1 = arith.constant 0 : i32
    return %c0_i32, %c0_i32_0 : i32, i32
  }
  func.func @transform_3(%arg0: i32) -> (i32, i32, i32) {
    %c0_i32 = arith.constant 0 : i32
    %c0_i32_0 = arith.constant 0 : i32
    %c0_i32_1 = arith.constant 0 : i32
    return %arg0, %c0_i32, %c0_i32_0 : i32, i32, i32
  }
}

</mosaic_0001>

<llo_original>
// kernel: tpu_custom_call.1
$region0: #{tpu_custom_call.1}
  #allocation0 [shape = 'u32[]', space=smem, size = 0x4, offset = 0x4, fixed_abs, tag = 'smem constant byte address 0x4 - core index']
  #allocation1 [shape = 'u32[72,128]{1,0:T(1,128)}', space=vmem, size = 0x9000, scoped, tag = 'internal scratch']
  %s0 = inlined_call_operand.hbm [shape: f32[1,8,384], index: 0, kind: input, shape index: {}]
  %s1 = inlined_call_operand.vmem [shape: bf16[8,72], index: 1, kind: input, shape index: {}]
  %s2 = inlined_call_operand.vmem [shape: f32[8,1], index: 2, kind: input, shape index: {}]
  %s3 = inlined_call_operand.hbm [shape: f32[1,8,384], index: 3, kind: output, shape index: {}]
  %s4 = sld [smem:[#allocation0]]
  $region26: #{tpu_custom_call.1} parent=0
    _
  %s6 = ssub.s32 1, %s4
  %s7 = scalar_select 0, %s6, %s4
  $region1: #{tpu_custom_call.1} parent=0
    #allocation2 [shape = 'u8[12288]{0}', space=vmem, size = 0x3000, scoped, tag = 'input window, operand 0, single buffered']
    #allocation3 [shape = 's32[1]{0}', space=sflag, size = 0x4, scoped, tag = 'scoped memory for tpu_custom_call.1']
    #allocation4 [shape = 's32[1]{0}', space=sflag, size = 0x4, scoped, tag = 'scoped memory for tpu_custom_call.1']
    #allocation5 [shape = 'u8[12288]{0}', space=vmem, size = 0x3000, scoped, tag = 'output window, operand 0, single buffered']
    %8 = vsyncpa [#allocation3], 0
    %9 = vsyncpa [#allocation4], 0
    // Predicated region
    $region2: #{tpu_custom_call.1} parent=1 // pred_check
      _
    $region3: #{tpu_custom_call.1} parent=1 // pred_check_branch
      %11 = sbr.rel (0) target = $region5
    $region4: #{tpu_custom_call.1} parent=1 // pred_region
      %13 = vsyncadd [#allocation3], 0
      %s15 = sshll.u32 %s0, 4
      %s16 = int_to_ptr.hbm [resolvable:$true] %s15
      %s17 = sshll.u32 [#allocation2], 4
      %s18 = int_to_ptr.vmem [resolvable:$true] %s17
      %20 = dma.hbm_to_vmem [thread:$0]  %s16, 384, %s18, [#allocation3]
    $region5: #{tpu_custom_call.1} parent=1 // pred_fallthru
      _
    // Predicated region
    $region6: #{tpu_custom_call.1} parent=1 // pred_check
      _
    $region7: #{tpu_custom_call.1} parent=1 // pred_check_branch
      %22 = sbr.rel (0) target = $region9
    $region8: #{tpu_custom_call.1} parent=1 // pred_region
      _
    $region9: #{tpu_custom_call.1} parent=1 // pred_fallthru
      _
    // Predicated region
    $region10: #{tpu_custom_call.1} parent=1 // pred_check
      _
    $region11: #{tpu_custom_call.1} parent=1 // pred_check_branch
      %24 = sbr.rel (0) target = $region13
    $region12: #{tpu_custom_call.1} parent=1 // pred_region
      _
    $region13: #{tpu_custom_call.1} parent=1 // pred_fallthru
      _
    // Predicated region
    $region14: #{tpu_custom_call.1} parent=1 // pred_check
      _
    $region15: #{tpu_custom_call.1} parent=1 // pred_check_branch
      %26 = sbr.rel (0) target = $region17
    $region16: #{tpu_custom_call.1} parent=1 // pred_region
      %28 = dma.done [#allocation3], 384
    $region17: #{tpu_custom_call.1} parent=1 // pred_fallthru
      _
    %v30 = vld [vmem:[#allocation2] sm:$0xff]
    %v31 = vld [vmem:[#allocation2 + $0x8] sm:$0xff]
    %v32 = vld [vmem:[#allocation2 + $0x10] sm:$0xff]
    %33 = vrot.lane.b32.xlu0 %v30, 127
    %v34 = vpop.permute.xlu0 %33
    %35 = vrot.lane.b32.xlu0 %v31, 127
    %v36 = vpop.permute.xlu0 %35
    %37 = vrot.lane.b32.xlu0 %v32, 127
    %v38 = vpop.permute.xlu0 %37
    %v39 = vlaneseq
    %v40 = vand.u32 %v39, 127
    %vm41 = vcmp.lt.s32.totalorder %v40, 127
    %v42 = vsel %vm41, %v36, %v38
    %v43 = vsel %vm41, %v34, %v36
    %v44 = vsel %vm41, %v38, %v34
    %45 = vrot.lane.b32.xlu0 %v30, 126
    %v46 = vpop.permute.xlu0 %45
    %47 = vrot.lane.b32.xlu0 %v31, 126
    %v48 = vpop.permute.xlu0 %47
    %49 = vrot.lane.b32.xlu0 %v32, 126
    %v50 = vpop.permute.xlu0 %49
    %vm51 = vcmp.lt.s32.totalorder %v40, 126
    %v52 = vsel %vm51, %v48, %v50
    %v53 = vsel %vm51, %v46, %v48
    %v54 = vsel %vm51, %v50, %v46
    %55 = vrot.lane.b32.xlu0 %v30, 110
    %v56 = vpop.permute.xlu0 %55
    %57 = vrot.lane.b32.xlu0 %v31, 110
    %v58 = vpop.permute.xlu0 %57
    %59 = vrot.lane.b32.xlu0 %v32, 110
    %v60 = vpop.permute.xlu0 %59
    %vm61 = vcmp.lt.s32.totalorder %v40, 110
    %v62 = vsel %vm61, %v58, %v60
    %v63 = vsel %vm61, %v56, %v58
    %v64 = vsel %vm61, %v60, %v56
    %65 = vrot.lane.b32.xlu0 %v30, 109
    %v66 = vpop.permute.xlu0 %65
    %67 = vrot.lane.b32.xlu0 %v31, 109
    %v68 = vpop.permute.xlu0 %67
    %69 = vrot.lane.b32.xlu0 %v32, 109
    %v70 = vpop.permute.xlu0 %69
    %vm71 = vcmp.lt.s32.totalorder %v40, 109
    %v72 = vsel %vm71, %v68, %v70
    %v73 = vsel %vm71, %v66, %v68
    %v74 = vsel %vm71, %v70, %v66
    %75 = vrot.lane.b32.xlu0 %v30, 108
    %v76 = vpop.permute.xlu0 %75
    %77 = vrot.lane.b32.xlu0 %v31, 108
    %v78 = vpop.permute.xlu0 %77
    %79 = vrot.lane.b32.xlu0 %v32, 108
    %v80 = vpop.permute.xlu0 %79
    %vm81 = vcmp.lt.s32.totalorder %v40, 108
    %v82 = vsel %vm81, %v78, %v80
    %v83 = vsel %vm81, %v76, %v78
    %v84 = vsel %vm81, %v80, %v76
    %85 = vrot.lane.b32.xlu0 %v30, 92
    %v86 = vpop.permute.xlu0 %85
    %87 = vrot.lane.b32.xlu0 %v31, 92
    %v88 = vpop.permute.xlu0 %87
    %89 = vrot.lane.b32.xlu0 %v32, 92
    %v90 = vpop.permute.xlu0 %89
    %vm91 = vcmp.lt.s32.totalorder %v40, 92
    %v92 = vsel %vm91, %v88, %v90
    %v93 = vsel %vm91, %v86, %v88
    %v94 = vsel %vm91, %v90, %v86
    %95 = vrot.lane.b32.xlu0 %v30, 91
    %v96 = vpop.permute.xlu0 %95
    %97 = vrot.lane.b32.xlu0 %v31, 91
    %v98 = vpop.permute.xlu0 %97
    %99 = vrot.lane.b32.xlu0 %v32, 91
    %v100 = vpop.permute.xlu0 %99
    %vm101 = vcmp.lt.s32.totalorder %v40, 91
    %v102 = vsel %vm101, %v98, %v100
    %v103 = vsel %vm101, %v96, %v98
    %v104 = vsel %vm101, %v100, %v96
    %105 = vrot.lane.b32.xlu0 %v30, 90
    %v106 = vpop.permute.xlu0 %105
    %107 = vrot.lane.b32.xlu0 %v31, 90
    %v108 = vpop.permute.xlu0 %107
    %109 = vrot.lane.b32.xlu0 %v32, 90
    %v110 = vpop.permute.xlu0 %109
    %vm111 = vcmp.lt.s32.totalorder %v40, 90
    %v112 = vsel %vm111, %v108, %v110
    %v113 = vsel %vm111, %v106, %v108
    %v114 = vsel %vm111, %v110, %v106
    %v115 = vpack.c.bf16 %v43, %v30
    %v116 = vpack.c.bf16 %v42, %v31
    %v117 = vpack.c.bf16 %v44, %v32
    %v118 = vpack.c.bf16 %v63, %v53
    %v119 = vpack.c.bf16 %v62, %v52
    %v120 = vpack.c.bf16 %v64, %v54
    %v121 = vpack.c.bf16 %v83, %v73
    %v122 = vpack.c.bf16 %v82, %v72
    %v123 = vpack.c.bf16 %v84, %v74
    %v124 = vpack.c.bf16 %v103, %v93
    %v125 = vpack.c.bf16 %v102, %v92
    %v126 = vpack.c.bf16 %v104, %v94
    %v127 = vpack.c.bf16 %v113, %v113
    %v128 = vpack.c.bf16 %v112, %v112
    %v129 = vpack.c.bf16 %v114, %v114
    %v130 = vld [vmem:[%s1] sm:$0xf]
    %v131 = vld [vmem:[%s2] sm:$0xff]
    %133 = vset.pattern.permute.xlu0 0
    %134 = vperm.xlu0 %133, %v131
    %v135 = vpop.permute.xlu0 %134
    %vm137 = vcmask 588800
    %v139 = vsel %vm137, %v130, 0
    %vm141 = vcmask 1043456
    %v143 = vsel %vm141, %v127, 0
    %v146 = vsel %vm141, %v128, 0
    %v149 = vsel %vm141, %v129, 0
    %151 = vmatpush.bf16.msra.mxu0 0
    %152 = vmatpush.bf16.msra.mxu0 0
    %153 = vmatpush.bf16.msra.mxu0 0
    %154 = vmatpush.bf16.msra.mxu0 %v143
    %155 = vmatpush.bf16.msra.mxu0 %v124
    %156 = vmatpush.bf16.msra.mxu0 %v121
    %157 = vmatpush.bf16.msra.mxu0 %v118
    %158 = vmatpush.bf16.msra.mxu0 %v115
    %159 = vmatmul.bf16.gmra.mxu0 %v139
    %v160 = vpop.f32.mrf.mxu0
    %v161 = vadd.f32 %v135, %v160
    %v162 = vpop.f32.mrf.mxu0
    %163 = vdwg.mxu0
    %164 = vmatpush.bf16.msra.mxu0 0
    %165 = vmatpush.bf16.msra.mxu0 0
    %166 = vmatpush.bf16.msra.mxu0 0
    %167 = vmatpush.bf16.msra.mxu0 %v146
    %168 = vmatpush.bf16.msra.mxu0 %v125
    %169 = vmatpush.bf16.msra.mxu0 %v122
    %170 = vmatpush.bf16.msra.mxu0 %v119
    %171 = vmatpush.bf16.msra.mxu0 %v116
    %172 = vmatmul.bf16.gmra.mxu0 %v139
    %v173 = vpop.f32.mrf.mxu0
    %v174 = vadd.f32 %v135, %v173
    %v175 = vpop.f32.mrf.mxu0
    %176 = vdwg.mxu0
    %177 = vmatpush.bf16.msra.mxu0 0
    %178 = vmatpush.bf16.msra.mxu0 0
    %179 = vmatpush.bf16.msra.mxu0 0
    %180 = vmatpush.bf16.msra.mxu0 %v149
    %181 = vmatpush.bf16.msra.mxu0 %v126
    %182 = vmatpush.bf16.msra.mxu0 %v123
    %183 = vmatpush.bf16.msra.mxu0 %v120
    %184 = vmatpush.bf16.msra.mxu0 %v117
    %185 = vmatmul.bf16.gmra.mxu0 %v139
    %v186 = vpop.f32.mrf.mxu0
    %v187 = vadd.f32 %v135, %v186
    %v188 = vpop.f32.mrf.mxu0
    %189 = vdwg.mxu0
    %v190 = vmax.f32 %v161, 0.0
    %v191 = vmax.f32 %v174, 0.0
    %v192 = vmax.f32 %v187, 0.0
    %v193 = vadd.f32 %v190, %v73
    %v194 = vadd.f32 %v191, %v72
    %v195 = vadd.f32 %v192, %v74
    %v196 = vmax.f32 %v193, 0.0
    %v197 = vmax.f32 %v194, 0.0
    %v198 = vmax.f32 %v195, 0.0
    %199 = vst [vmem:[#allocation5] sm:$0xff] %v196
    %200 = vst [vmem:[#allocation5 + $0x8] sm:$0xff] %v197
    %201 = vst [vmem:[#allocation5 + $0x10] sm:$0xff] %v198
    // Predicated region
    $region18: #{tpu_custom_call.1} parent=1 // pred_check
      _
    $region19: #{tpu_custom_call.1} parent=1 // pred_check_branch
      %203 = sbr.rel (0) target = $region21
    $region20: #{tpu_custom_call.1} parent=1 // pred_region
      %205 = vsyncadd [#allocation4], 0
      %s207 = sshll.u32 [#allocation5], 4
      %s208 = int_to_ptr.vmem [resolvable:$true] %s207
      %s209 = sshll.u32 %s3, 4
      %s210 = int_to_ptr.hbm [resolvable:$true] %s209
      %212 = dma.vmem_to_hbm [thread:$0]  %s208, 384, %s210, [#allocation4]
    $region21: #{tpu_custom_call.1} parent=1 // pred_fallthru
      _
    // Predicated region
    $region22: #{tpu_custom_call.1} parent=1 // pred_check
      _
    $region23: #{tpu_custom_call.1} parent=1 // pred_check_branch
      %214 = sbr.rel (0) target = $region25
    $region24: #{tpu_custom_call.1} parent=1 // pred_region
      %216 = dma.done [#allocation4], 384
    $region25: #{tpu_custom_call.1} parent=1 // pred_fallthru
      _
    %217 = vsyncpa [#allocation3], 1
    %218 = vsyncpa [#allocation4], 1

</llo_original>
